<compile_context>
chip_gen: v7x
topology: tpu7x:2x2x1
jax: 0.10.0
libtpu: 0.0.40
codegen_flags: <defaults>
</compile_context>

<pallas_src>
import functools

import jax
import jax.numpy as jnp
from jax.experimental import pallas as pl
from jax.experimental.pallas import tpu as pltpu


def _cdiv(a, b):
    return (a + b - 1) // b


def _round_up(a, b):
    return _cdiv(a, b) * b


def _instance_norm_kernel(x_ref, p_ref, o_ref, *, eps, hw, padded):
    # x_ref: (TR, HW_pad)   tile of (sample, channel) instance rows
    # p_ref: (TR, 2)        per-row [scale, shift]
    # o_ref: (TR, HW_pad)
    x = x_ref[...].astype(jnp.float32)
    inv_n = 1.0 / float(hw)

    if padded:
        lane = jax.lax.broadcasted_iota(jnp.int32, x.shape, 1)
        valid = lane < hw
        xs = jnp.where(valid, x, 0.0)
    else:
        xs = x

    # per-instance mean over the (true) spatial extent
    mean = jnp.sum(xs, axis=1, keepdims=True) * inv_n
    centered = x - mean
    # biased variance, two-pass centered form (numerically safer than E[x^2]-mean^2)
    csq = jnp.where(valid, centered, 0.0) if padded else centered
    var = jnp.sum(csq * csq, axis=1, keepdims=True) * inv_n

    inv_std = jax.lax.rsqrt(var + eps)
    scale = p_ref[:, 0:1]
    shift = p_ref[:, 1:2]
    # fold scale into the (TR,1) inv_std first: one full-tile multiply + one add
    o_ref[...] = (centered * (inv_std * scale) + shift).astype(o_ref.dtype)


def instance_normalization(x, scale, shift, eps=1e-9,
                           vmem_tile_budget_bytes=40 * 1024 * 1024,
                           row_block=None):
    """x: (N, C, H, W) float32; scale/shift: (C,) float32."""
    N, C, H, W = x.shape
    HW = H * W
    R = N * C

    # Lane-dense last dim: pad HW up to a multiple of 128 (no-op if aligned).
    HW_pad = _round_up(HW, 128)
    padded_hw = HW_pad != HW

    # --- choose row_block from the VMEM budget -------------------------------
    # footprint per grid step ~= 4B * row_block * HW_pad * (in + out) * 2 bufs
    if row_block is None:
        target = vmem_tile_budget_bytes // (16 * HW_pad)
        target = max(8, min(512, (target // 8) * 8))
        num_blocks = max(1, _cdiv(R, target))
        if R > 8:
            # keep >= 2 grid steps so the "parallel" axis shards across both
            # TensorCores on v7x
            num_blocks = max(num_blocks, 2)
        row_block = _round_up(_cdiv(R, num_blocks), 8)
    num_blocks = _cdiv(R, row_block)
    R_pad = row_block * num_blocks

    # --- flatten + pad --------------------------------------------------------
    x2d = x.reshape(R, HW).astype(jnp.float32)
    if padded_hw or R_pad != R:
        x2d = jnp.pad(x2d, ((0, R_pad - R), (0, HW_pad - HW)))

    # one (R_pad, 2) param array: [:, 0] = scale, [:, 1] = shift (channel params
    # replicated over the batch; padded rows get scale=1, shift=0)
    scale_rows = jnp.tile(scale.astype(jnp.float32), N)
    shift_rows = jnp.tile(shift.astype(jnp.float32), N)
    params = jnp.stack([scale_rows, shift_rows], axis=1)  # (R, 2)
    if R_pad != R:
        pad_params = jnp.concatenate(
            [jnp.ones((R_pad - R, 1), jnp.float32),
             jnp.zeros((R_pad - R, 1), jnp.float32)], axis=1)
        params = jnp.concatenate([params, pad_params], axis=0)

    kernel = functools.partial(
        _instance_norm_kernel, eps=float(eps), hw=int(HW), padded=padded_hw)

    out2d = pl.pallas_call(
        kernel,
        out_shape=jax.ShapeDtypeStruct((R_pad, HW_pad), x.dtype),
        grid_spec=pltpu.PrefetchScalarGridSpec(
            num_scalar_prefetch=0,
            grid=(num_blocks,),
            in_specs=[
                pl.BlockSpec((row_block, HW_pad), lambda i: (i, 0)),
                pl.BlockSpec((row_block, 2), lambda i: (i, 0)),
            ],
            out_specs=pl.BlockSpec((row_block, HW_pad), lambda i: (i, 0)),
        ),
        compiler_params=pltpu.CompilerParams(
            dimension_semantics=("parallel",),
            vmem_limit_bytes=64 * 1024 * 1024,
        ),
    )(x2d, params)

    out2d = out2d[:R, :HW]
    return out2d.reshape(N, C, H, W)


def _reference(x, scale, shift, eps=1e-9):
    # pure-JAX reference matching the PyTorch forward exactly
    N, C, H, W = x.shape
    n = H * W
    t = x.reshape(N, C, n)
    mean = jnp.mean(t, axis=2, keepdims=True)[..., None]
    var_unbiased = jnp.var(t, axis=2, keepdims=True, ddof=1)[..., None]
    var = var_unbiased * ((n - 1) / float(n))
    out = (x - mean) / jnp.sqrt(var + eps)
    return out * scale[None, :, None, None] + shift[None, :, None, None]


if __name__ == "__main__":
    key = jax.random.PRNGKey(0)
    k_x, k_scale, k_x2 = jax.random.split(key, 3)

    # Primary test: typical lane-aligned shape.
    N, C, H, W = 2, 4, 16, 16
    x = jax.random.normal(k_x, (N, C, H, W), dtype=jnp.float32)
    # Deterministic param init mirroring _reset_parameters(): scale ~ U(0,1), shift = 0
    scale = jax.random.uniform(k_scale, (C,), dtype=jnp.float32)
    shift = jnp.zeros((C,), dtype=jnp.float32)

    out = instance_normalization(x, scale, shift, eps=1e-9)
    out = jax.block_until_ready(out)
    ref = _reference(x, scale, shift, eps=1e-9)
    assert out.shape == (N, C, H, W)
    assert jnp.allclose(out, ref, atol=1e-4, rtol=1e-4), "mismatch vs reference (aligned)"

    # Secondary test: non-128-aligned spatial size exercises the masked/padded path.
    H2, W2 = 5, 7
    x2 = jax.random.normal(k_x2, (N, C, H2, W2), dtype=jnp.float32)
    out2 = instance_normalization(x2, scale, shift, eps=1e-9)
    out2 = jax.block_until_ready(out2)
    ref2 = _reference(x2, scale, shift, eps=1e-9)
    assert out2.shape == (N, C, H2, W2)
    assert jnp.allclose(out2, ref2, atol=1e-4, rtol=1e-4), "mismatch vs reference (padded)"

    print("KERNEL_OK")
</pallas_src>

<mosaic_0001>
module attributes {stable_mosaic.version = 11 : i64} {
  func.func @_instance_norm_kernel(%arg0: i32, %arg1: memref<8x256xf32, #tpu.memory_space<vmem>>, %arg2: memref<8x2xf32, #tpu.memory_space<vmem>>, %arg3: memref<8x256xf32, #tpu.memory_space<vmem>>) attributes {dimension_semantics = [#tpu.dimension_semantics<parallel>], iteration_bounds = array<i64: 1>, scalar_prefetch = 0 : i64, scratch_operands = 0 : i64, tpu.core_type = #tpu.core_type<tc>, window_params = [{transform_indices = @transform_0, window_bounds = array<i64: 8, 256>}, {transform_indices = @transform_1, window_bounds = array<i64: 8, 2>}, {transform_indices = @transform_2, window_bounds = array<i64: 8, 256>}]} {
    %c0 = arith.constant 0 : index
    %c0_0 = arith.constant 0 : index
    %0 = vector.load %arg1[%c0, %c0_0] : memref<8x256xf32, #tpu.memory_space<vmem>>, vector<8x256xf32>
    %cst = arith.constant dense<0.000000e+00> : vector<8xf32>
    %1 = vector.multi_reduction <add>, %0, %cst [1] : vector<8x256xf32> to vector<8xf32>
    %2 = vector.shape_cast %1 : vector<8xf32> to vector<8x1xf32>
    %cst_1 = arith.constant 3.906250e-03 : f32
    %3 = vector.broadcast %cst_1 : f32 to vector<8x1xf32>
    %4 = arith.mulf %2, %3 : vector<8x1xf32>
    %5 = vector.broadcast %4 : vector<8x1xf32> to vector<8x256xf32>
    %6 = arith.subf %0, %5 : vector<8x256xf32>
    %7 = arith.mulf %6, %6 : vector<8x256xf32>
    %cst_2 = arith.constant dense<0.000000e+00> : vector<8xf32>
    %8 = vector.multi_reduction <add>, %7, %cst_2 [1] : vector<8x256xf32> to vector<8xf32>
    %9 = vector.shape_cast %8 : vector<8xf32> to vector<8x1xf32>
    %cst_3 = arith.constant 3.906250e-03 : f32
    %10 = vector.broadcast %cst_3 : f32 to vector<8x1xf32>
    %11 = arith.mulf %9, %10 : vector<8x1xf32>
    %cst_4 = arith.constant 9.99999971E-10 : f32
    %12 = vector.broadcast %cst_4 : f32 to vector<8x1xf32>
    %13 = arith.addf %11, %12 : vector<8x1xf32>
    %14 = math.rsqrt %13 : vector<8x1xf32>
    %c0_5 = arith.constant 0 : index
    %c0_6 = arith.constant 0 : index
    %15 = vector.load %arg2[%c0_5, %c0_6] : memref<8x2xf32, #tpu.memory_space<vmem>>, vector<8x1xf32>
    %c0_7 = arith.constant 0 : index
    %c1 = arith.constant 1 : index
    %16 = vector.load %arg2[%c0_7, %c1] : memref<8x2xf32, #tpu.memory_space<vmem>>, vector<8x1xf32>
    %17 = arith.mulf %14, %15 : vector<8x1xf32>
    %18 = vector.broadcast %17 : vector<8x1xf32> to vector<8x256xf32>
    %19 = arith.mulf %6, %18 : vector<8x256xf32>
    %20 = vector.broadcast %16 : vector<8x1xf32> to vector<8x256xf32>
    %21 = arith.addf %19, %20 : vector<8x256xf32>
    %c0_8 = arith.constant 0 : index
    %c0_9 = arith.constant 0 : index
    %22 = vector.load %arg3[%c0_8, %c0_9] : memref<8x256xf32, #tpu.memory_space<vmem>>, vector<8x256xf32>
    tpu.vector_store %arg3[%c0_8, %c0_9], %21 {strides = array<i32>} : memref<8x256xf32, #tpu.memory_space<vmem>>, vector<8x256xf32>,
    return
  }
  func.func @transform_0(%arg0: i32) -> (i32, i32) {
    %c0_i32 = arith.constant 0 : i32
    %c0_i32_0 = arith.constant 0 : i32
    return %arg0, %c0_i32 : i32, i32
  }
  func.func @transform_1(%arg0: i32) -> (i32, i32) {
    %c0_i32 = arith.constant 0 : i32
    %c0_i32_0 = arith.constant 0 : i32
    return %arg0, %c0_i32 : i32, i32
  }
  func.func @transform_2(%arg0: i32) -> (i32, i32) {
    %c0_i32 = arith.constant 0 : i32
    %c0_i32_0 = arith.constant 0 : i32
    return %arg0, %c0_i32 : i32, i32
  }
}

</mosaic_0001>

<llo_original>
// kernel: tpu_custom_call.1
$region0: #{tpu_custom_call.1}
  #allocation0 [shape = 'u32[]', space=smem, size = 0x4, offset = 0x4, fixed_abs, tag = 'smem constant byte address 0x4 - core index']
  #allocation1 [shape = 'u32[144,128]{1,0:T(1,128)}', space=vmem, size = 0x12000, scoped, tag = 'internal scratch']
  %s0 = inlined_call_operand.hbm [shape: f32[8,256], index: 0, kind: input, shape index: {}]
  %s1 = inlined_call_operand.hbm [shape: f32[8,2], index: 1, kind: input, shape index: {}]
  %s2 = inlined_call_operand.hbm [shape: f32[8,256], index: 2, kind: output, shape index: {}]
  %s3 = sld [smem:[#allocation0]]
  $region26: #{tpu_custom_call.1} parent=0
    _
  %s5 = ssub.s32 1, %s3
  %s6 = scalar_select 0, %s5, %s3
  $region1: #{tpu_custom_call.1} parent=0
    #allocation2 [shape = 'u8[8192]{0}', space=vmem, size = 0x2000, scoped, tag = 'input window, operand 0, single buffered']
    #allocation3 [shape = 's32[1]{0}', space=sflag, size = 0x4, scoped, tag = 'scoped memory for tpu_custom_call.1']
    #allocation4 [shape = 's32[1]{0}', space=sflag, size = 0x4, scoped, tag = 'scoped memory for tpu_custom_call.1']
    #allocation5 [shape = 'u8[4096]{0}', space=vmem, size = 0x1000, scoped, tag = 'input window, operand 1, single buffered']
    #allocation6 [shape = 's32[1]{0}', space=sflag, size = 0x4, scoped, tag = 'scoped memory for tpu_custom_call.1']
    #allocation7 [shape = 'u8[8192]{0}', space=vmem, size = 0x2000, scoped, tag = 'output window, operand 0, single buffered']
    %7 = vsyncpa [#allocation3], 0
    %8 = vsyncpa [#allocation6], 0
    %9 = vsyncpa [#allocation4], 0
    // Predicated region
    $region2: #{tpu_custom_call.1} parent=1 // pred_check
      _
    $region3: #{tpu_custom_call.1} parent=1 // pred_check_branch
      %11 = sbr.rel (0) target = $region5
    $region4: #{tpu_custom_call.1} parent=1 // pred_region
      %s13 = ssub.s32 256, 256
      %14 = vsyncadd [#allocation3], %s13
      %s16 = sshll.u32 [#allocation2], 4
      %s17 = int_to_ptr.vmem [resolvable:$true] %s16
      %19 = dma.hbm_to_vmem [thread:$0]  %s0, 256, %s17, [#allocation3]
    $region5: #{tpu_custom_call.1} parent=1 // pred_fallthru
      _
    // Predicated region
    $region6: #{tpu_custom_call.1} parent=1 // pred_check
      _
    $region7: #{tpu_custom_call.1} parent=1 // pred_check_branch
      %21 = sbr.rel (0) target = $region9
    $region8: #{tpu_custom_call.1} parent=1 // pred_region
      %s23 = ssub.s32 128, 128
      %24 = vsyncadd [#allocation6], %s23
      %s26 = sshll.u32 [#allocation5], 4
      %s27 = int_to_ptr.vmem [resolvable:$true] %s26
      %29 = dma.hbm_to_vmem [thread:$0]  %s1, 128, %s27, [#allocation6]
    $region9: #{tpu_custom_call.1} parent=1 // pred_fallthru
      _
    // Predicated region
    $region10: #{tpu_custom_call.1} parent=1 // pred_check
      _
    $region11: #{tpu_custom_call.1} parent=1 // pred_check_branch
      %31 = sbr.rel (0) target = $region13
    $region12: #{tpu_custom_call.1} parent=1 // pred_region
      %32 = dma.done [#allocation3], 256
    $region13: #{tpu_custom_call.1} parent=1 // pred_fallthru
      _
    // Predicated region
    $region14: #{tpu_custom_call.1} parent=1 // pred_check
      _
    $region15: #{tpu_custom_call.1} parent=1 // pred_check_branch
      %34 = sbr.rel (0) target = $region17
    $region16: #{tpu_custom_call.1} parent=1 // pred_region
      %35 = dma.done [#allocation6], 128
    $region17: #{tpu_custom_call.1} parent=1 // pred_fallthru
      _
    %v36 = vld [vmem:[#allocation2] sm:$0xff]
    %v37 = vld [vmem:[#allocation2 + $0x8] sm:$0xff]
    %v38 = vadd.f32 %v36, %v37
    %39 = vadd.xlane.f32.xlu0 %v38
    %v40 = vpop.xlane.xlu0 %39
    %v41 = vmul.f32 %v40, 0.00390625
    %v42 = vsub.f32 %v36, %v41
    %v43 = vsub.f32 %v37, %v41
    %v44 = vmul.f32 %v42, %v42
    %v45 = vmul.f32 %v43, %v43
    %v46 = vadd.f32 %v44, %v45
    %47 = vadd.xlane.f32.xlu0 %v46
    %v48 = vpop.xlane.xlu0 %47
    %v49 = vmul.f32 %v48, 0.00390625
    %v50 = vadd.f32 %v49, 1e-09
    %v51 = vrsqrt.pop %v50
    %v52 = vld [vmem:[#allocation5] sm:$0xff]
    %v53 = vmul.f32 %v51, %v52
    %55 = vset.pattern.permute.xlu0 0
    %56 = vperm.xlu0 %55, %v53
    %v57 = vpop.permute.xlu0 %56
    %v59 = vmul.f32 %v42, %v57
    %v60 = vmul.f32 %v43, %v57
    %62 = vset.pattern.permute.xlu0 1
    %63 = vperm.xlu0 %62, %v52
    %v64 = vpop.permute.xlu0 %63
    %v66 = vadd.f32 %v59, %v64
    %v67 = vadd.f32 %v60, %v64
    %68 = vst [vmem:[#allocation7] sm:$0xff] %v66
    %69 = vst [vmem:[#allocation7 + $0x8] sm:$0xff] %v67
    // Predicated region
    $region18: #{tpu_custom_call.1} parent=1 // pred_check
      _
    $region19: #{tpu_custom_call.1} parent=1 // pred_check_branch
      %71 = sbr.rel (0) target = $region21
    $region20: #{tpu_custom_call.1} parent=1 // pred_region
      %s73 = ssub.s32 256, 256
      %74 = vsyncadd [#allocation4], %s73
      %s76 = sshll.u32 [#allocation7], 4
      %s77 = int_to_ptr.vmem [resolvable:$true] %s76
      %79 = dma.vmem_to_hbm [thread:$0]  %s77, 256, %s2, [#allocation4]
    $region21: #{tpu_custom_call.1} parent=1 // pred_fallthru
      _
    // Predicated region
    $region22: #{tpu_custom_call.1} parent=1 // pred_check
      _
    $region23: #{tpu_custom_call.1} parent=1 // pred_check_branch
      %81 = sbr.rel (0) target = $region25
    $region24: #{tpu_custom_call.1} parent=1 // pred_region
      %82 = dma.done [#allocation4], 256
    $region25: #{tpu_custom_call.1} parent=1 // pred_fallthru
      _
    %83 = vsyncpa [#allocation3], 1
    %84 = vsyncpa [#allocation6], 1
    %85 = vsyncpa [#allocation4], 1

</llo_original>
